<compile_context>
chip_gen: v6e
topology: v6e:2x2x1
jax: 0.10.0
libtpu: 0.0.40
codegen_flags: <defaults>
</compile_context>

<pallas_src>
import random

import jax
import jax.numpy as jnp
from jax.experimental import pallas as pl
from jax.experimental.pallas import tpu as pltpu


# ---------------------------------------------------------------------------
# host-side helpers
# ---------------------------------------------------------------------------

def _runs_from_keep(keep_idx):
    """Decompose sorted kept indices into contiguous (src, dst, length) runs."""
    runs = []
    i, dst, n = 0, 0, len(keep_idx)
    while i < n:
        j = i
        while j + 1 < n and keep_idx[j + 1] == keep_idx[j] + 1:
            j += 1
        length = j - i + 1
        runs.append((int(keep_idx[i]), int(dst), int(length)))
        dst += length
        i = j + 1
    return tuple(runs)


def _pick_d_block(D, S, itemsize):
    """Largest lane-dense (multiple-of-128) divisor of D whose (S, d) slab
    stays under ~2 MiB; falls back to the full feature dim when D is not
    128-aligned (block equal to the full array dim is always legal)."""
    if D % 128 != 0:
        return D
    budget = 2 * 1024 * 1024
    best = None
    d = 128
    while d <= D:
        if D % d == 0 and d * S * itemsize <= budget:
            best = d
        d += 128
    return best if best is not None else 128


def _make_kernel(runs, n_tensors):
    def kernel(*refs):
        x_refs = refs[:n_tensors]
        o_refs = refs[n_tensors:]
        # Static unroll over <= max_num + 1 contiguous kept runs; each is a
        # rectangular (run_len, d_blk) slab copy inside VMEM.  The union of
        # runs covers the whole output block exactly once.
        for src, dst, length in runs:
            for x_ref, o_ref in zip(x_refs, o_refs):
                o_ref[0, dst:dst + length, :] = x_ref[0, src:src + length, :]
    return kernel


_CUTOUT_CACHE = {}


def _build_cutout_call(shapes, dtypes, runs, n_keep):
    """shapes: tuple of (B, S, D) per tensor; dtypes: matching dtypes."""
    n_tensors = len(shapes)
    B, S = shapes[0][0], shapes[0][1]
    Ds = [shp[2] for shp in shapes]
    itemsizes = [jnp.dtype(dt).itemsize for dt in dtypes]

    if len(set(Ds)) == 1:
        d_blk = _pick_d_block(Ds[0], S, max(itemsizes))
        d_blks = [d_blk] * n_tensors
        n_d_chunks = Ds[0] // d_blk
    else:
        # Mixed feature dims: use full-D blocks (single chunk) for all.
        d_blks = list(Ds)
        n_d_chunks = 1

    grid = (B, n_d_chunks)

    in_specs = [
        pl.BlockSpec((1, S, d_blks[t]), lambda b, d: (b, 0, d))
        for t in range(n_tensors)
    ]
    out_specs = [
        pl.BlockSpec((1, n_keep, d_blks[t]), lambda b, d: (b, 0, d))
        for t in range(n_tensors)
    ]
    out_shapes = [
        jax.ShapeDtypeStruct((B, n_keep, Ds[t]), dtypes[t])
        for t in range(n_tensors)
    ]

    # Double-buffered in+out blocks with headroom; keep well under v7x's
    # 64 MiB physical VMEM while raising the default scoped limit if needed.
    block_bytes = sum(
        2 * (S + n_keep) * d_blks[t] * itemsizes[t] for t in range(n_tensors)
    )
    vmem_limit = int(min(max(2 * block_bytes, 16 << 20), 48 << 20))

    call = pl.pallas_call(
        _make_kernel(runs, n_tensors),
        out_shape=out_shapes,
        grid=grid,
        in_specs=in_specs,
        out_specs=out_specs,
        compiler_params=pltpu.CompilerParams(
            # Every (b, d-chunk) block is written exactly once -> both axes
            # are parallel; lets v7x shard the grid over its 2 TensorCores.
            dimension_semantics=("parallel", "parallel"),
            vmem_limit_bytes=vmem_limit,
        ),
    )
    return jax.jit(call)


def sequence_cutout_gather(xs, keep_idx):
    """xs: tuple of (B, S, D) arrays.  Returns tuple of x[:, keep_idx, :] for
    each x, computed with a single fused Pallas TPU kernel."""
    xs = tuple(xs)
    B, S = xs[0].shape[0], xs[0].shape[1]
    for x in xs:
        assert x.ndim == 3 and x.shape[0] == B and x.shape[1] == S, x.shape

    keep_idx = [int(i) for i in keep_idx]
    runs = _runs_from_keep(keep_idx)
    n_keep = len(keep_idx)

    shapes = tuple(tuple(x.shape) for x in xs)
    dtype_names = tuple(jnp.dtype(x.dtype).name for x in xs)
    key = (shapes, dtype_names, runs)
    fn = _CUTOUT_CACHE.get(key)
    if fn is None:
        fn = _build_cutout_call(shapes, tuple(x.dtype for x in xs), runs, n_keep)
        _CUTOUT_CACHE[key] = fn
    outs = fn(*xs)
    return tuple(outs)


class SequenceCutOutPallas:
    """JAX/Pallas port of base_model.Trm_utils.SequenceCutOut (forward only)."""

    def __init__(self, prob, max_num, seed=0):
        self.prob = prob
        self.max_num = max_num
        # Host-side RNG, mirroring the PyTorch module's use of `random`.
        self._rng = random.Random(seed)

    def __call__(self, x):
        if self._rng.random() < self.prob:
            is_tuple = isinstance(x, tuple)
            xs = x if is_tuple else (x,)
            seq_len = xs[0].shape[1]
            cutout_num = self._rng.randint(1, self.max_num)
            candidates = list(range(seq_len))
            candidates.remove(seq_len // 2)
            cutout_index = set(self._rng.sample(candidates, cutout_num))
            keep_idx = [i for i in range(seq_len) if i not in cutout_index]
            outs = sequence_cutout_gather(xs, keep_idx)
            return outs if is_tuple else outs[0]
        return x


if __name__ == "__main__":
    # Small shapes consistent with the module's (batch, seq, hidden) layout.
    B, S, D = 2, 8, 32
    key = jax.random.PRNGKey(0)
    k1, k2 = jax.random.split(key)
    x = jax.random.normal(k1, (B, S, D), dtype=jnp.float32)
    y = jax.random.normal(k2, (B, S, D), dtype=jnp.float32)

    # prob=1.0 so the cutout path (and the Pallas kernel) is always taken.
    out = SequenceCutOutPallas(prob=1.0, max_num=3, seed=0)(x)
    out = jax.block_until_ready(out)

    # Fused tuple path (same seed -> same RNG draws -> same cutout pattern).
    out_tup = SequenceCutOutPallas(prob=1.0, max_num=3, seed=0)((x, y))
    out_tup = jax.block_until_ready(out_tup)

    # Reference: replicate the module's RNG consumption exactly.
    ref_rng = random.Random(0)
    assert ref_rng.random() < 1.0
    cutout_num = ref_rng.randint(1, 3)
    cands = list(range(S))
    cands.remove(S // 2)
    cut = set(ref_rng.sample(cands, cutout_num))
    keep = [i for i in range(S) if i not in cut]
    keep_arr = jnp.asarray(keep)
    ref_x = x[:, keep_arr, :]
    ref_y = y[:, keep_arr, :]

    assert out.shape == (B, len(keep), D), (out.shape, (B, len(keep), D))
    assert jnp.array_equal(out, ref_x), "single-tensor path mismatch"
    assert out_tup[0].shape == (B, len(keep), D)
    assert jnp.array_equal(out_tup[0], ref_x), "tuple path (x) mismatch"
    assert jnp.array_equal(out_tup[1], ref_y), "tuple path (y) mismatch"

    print("KERNEL_OK")
</pallas_src>

<mosaic_0001>
module attributes {stable_mosaic.version = 11 : i64} {
  func.func @kernel(%arg0: i32, %arg1: i32, %arg2: memref<1x8x32xf32, #tpu.memory_space<vmem>>, %arg3: memref<1x6x32xf32, #tpu.memory_space<vmem>>) attributes {dimension_semantics = [#tpu.dimension_semantics<parallel>, #tpu.dimension_semantics<parallel>], iteration_bounds = array<i64: 2, 1>, scalar_prefetch = 0 : i64, scratch_operands = 0 : i64, tpu.core_type = #tpu.core_type<tc>, window_params = [{transform_indices = @transform_0, window_bounds = array<i64: 1, 8, 32>}, {transform_indices = @transform_1, window_bounds = array<i64: 1, 6, 32>}]} {
    %c0 = arith.constant 0 : index
    %c1 = arith.constant 1 : index
    %c0_0 = arith.constant 0 : index
    %0 = vector.load %arg2[%c0, %c1, %c0_0] : memref<1x8x32xf32, #tpu.memory_space<vmem>>, vector<1x1x32xf32>
    %1 = vector.shape_cast %0 : vector<1x1x32xf32> to vector<1x32xf32>
    %c0_1 = arith.constant 0 : index
    %c0_2 = arith.constant 0 : index
    %c0_3 = arith.constant 0 : index
    %2 = vector.load %arg3[%c0_1, %c0_2, %c0_3] : memref<1x6x32xf32, #tpu.memory_space<vmem>>, vector<1x1x32xf32>
    %3 = vector.shape_cast %2 : vector<1x1x32xf32> to vector<1x32xf32>
    %4 = vector.shape_cast %1 : vector<1x32xf32> to vector<1x1x32xf32>
    tpu.vector_store %arg3[%c0_1, %c0_2, %c0_3], %4 {strides = array<i32>} : memref<1x6x32xf32, #tpu.memory_space<vmem>>, vector<1x1x32xf32>,
    %c0_4 = arith.constant 0 : index
    %c3 = arith.constant 3 : index
    %c0_5 = arith.constant 0 : index
    %5 = vector.load %arg2[%c0_4, %c3, %c0_5] : memref<1x8x32xf32, #tpu.memory_space<vmem>>, vector<1x5x32xf32>
    %6 = vector.shape_cast %5 : vector<1x5x32xf32> to vector<5x32xf32>
    %c0_6 = arith.constant 0 : index
    %c1_7 = arith.constant 1 : index
    %c0_8 = arith.constant 0 : index
    %7 = vector.load %arg3[%c0_6, %c1_7, %c0_8] : memref<1x6x32xf32, #tpu.memory_space<vmem>>, vector<1x5x32xf32>
    %8 = vector.shape_cast %7 : vector<1x5x32xf32> to vector<5x32xf32>
    %9 = vector.shape_cast %6 : vector<5x32xf32> to vector<1x5x32xf32>
    tpu.vector_store %arg3[%c0_6, %c1_7, %c0_8], %9 {strides = array<i32>} : memref<1x6x32xf32, #tpu.memory_space<vmem>>, vector<1x5x32xf32>,
    return
  }
  func.func @transform_0(%arg0: i32, %arg1: i32) -> (i32, i32, i32) {
    %c0_i32 = arith.constant 0 : i32
    %c0_i32_0 = arith.constant 0 : i32
    return %arg0, %c0_i32, %arg1 : i32, i32, i32
  }
  func.func @transform_1(%arg0: i32, %arg1: i32) -> (i32, i32, i32) {
    %c0_i32 = arith.constant 0 : i32
    %c0_i32_0 = arith.constant 0 : i32
    return %arg0, %c0_i32, %arg1 : i32, i32, i32
  }
}

</mosaic_0001>

<llo_original>
// kernel: tpu_custom_call.1
$region0: #{tpu_custom_call.1}
  #allocation0 [shape = 'u32[]', space=smem, size = 0x4, offset = 0x4, fixed_abs, tag = 'smem constant byte address 0x4 - core index']
  #allocation1 [shape = 'u32[144,128]{1,0:T(1,128)}', space=vmem, size = 0x12000, scoped, tag = 'internal scratch']
  %s0 = inlined_call_operand.hbm [shape: f32[2,8,32], index: 0, kind: input, shape index: {}]
  %s1 = inlined_call_operand.vmem [shape: f32[2,6,32], index: 1, kind: output, shape index: {}]
  %s2 = sld [smem:[#allocation0]]
  $region41: #{tpu_custom_call.1} parent=0
    _
  %s4 = ssub.s32 1, %s2
  %s5 = scalar_select 0, %s4, %s2
  $region1: #{tpu_custom_call.1} parent=0
    #allocation2 [shape = 'u8[8192]{0}', space=vmem, size = 0x2000, scoped, tag = 'input window, operand 0']
    #allocation3 [shape = 's32[2]{0}', space=sflag, size = 0x8, scoped, tag = 'scoped memory for tpu_custom_call.1']
    %6 = vsyncpa [#allocation3], 0
    %s7 = scalar_lea.sflag [#allocation3], 1
    %8 = vsyncpa %s7, 0
    loop: start=0, step=1, limit=4
    $region2: #{tpu_custom_call.1} parent=1 // loop_pre_header
      _
    $region3: #{tpu_custom_call.1} parent=1 // loop_header
      %s10 = sphi 0, %s14
      %p11 = scmp.ge.s32.totalorder %s10, 4
      %s17 = sphi 0, %s29
      %s18 = sphi 0, %s25
      %s19 = sphi 0, %s17
      %s20 = sphi 0, %s18
      %s21 = sphi 0, %s19
      %s22 = sphi 0, %s20
      %s34 = sphi 0, %s36
      %s37 = sphi 0, %s34
      %s38 = sphi 0, %s37
      %s54 = sphi 0, %s38
      %s62 = sphi 0, %s64
      %s65 = sphi 0, %s62
      %s66 = sphi 0, %s65
      %s82 = sphi 0, %s66
    $region4: #{tpu_custom_call.1} parent=1 // loop_header_branch
      %13 = sbr.rel (%p11) target = $region8
    $region5: #{tpu_custom_call.1} parent=1 // loop_body
      %s15 = ssub.s32 %s10, 1
      %s16 = ssub.s32 %s10, 2
      %s23 = sadd.s32 1, %s18
      %p24 = scmp.ge.s32.totalorder %s23, 1
      %s25 = scalar_select %p24, 0, %s23
      %s26 = sadd.s32 1, %s17
      %s27 = scalar_select %p24, %s26, %s17
      %p28 = scmp.ge.s32.totalorder %s27, 2
      %s29 = scalar_select %p28, 0, %s27
      %s30 = ssub.s32 %s17, %s29
      %s31 = ssub.s32 %s18, %s25
      %s32 = sor.u32 %s30, %s31
      %p33 = scmp.eq.s32.totalorder %s32, 0
      %s35 = sadd.s32 %s34, 1
      %s36 = scalar_select %p33, %s34, %s35
      %p39 = pneg %p33
      %p40 = scmp.eq.s32.totalorder %s10, 1
      %p41 = por %p39, %p40
      %p42 = scmp.ne.s32.totalorder %s34, %s37
      %p43 = scmp.eq.s32.totalorder %s10, 0
      %p44 = por %p42, %p43
      %p45 = scmp.ne.s32.totalorder %s34, %s37
      %p46 = scmp.eq.s32.totalorder %s15, 1
      %p47 = por %p45, %p46
      %p48 = scmp.ne.s32.totalorder %s37, %s38
      %p49 = scmp.eq.s32.totalorder %s15, 0
      %p50 = por %p48, %p49
      %p51 = scmp.ne.s32.totalorder %s37, %s38
      %p52 = scmp.eq.s32.totalorder %s16, 1
      %p53 = por %p51, %p52
      %p55 = scmp.ne.s32.totalorder %s38, %s54
      %p56 = scmp.eq.s32.totalorder %s16, 0
      %p57 = por %p55, %p56
      %s58 = ssub.s32 %s17, %s29
      %s59 = ssub.s32 %s18, %s25
      %s60 = sor.u32 %s58, %s59
      %p61 = scmp.eq.s32.totalorder %s60, 0
      %s63 = sadd.s32 %s62, 1
      %s64 = scalar_select %p61, %s62, %s63
      %p67 = pneg %p61
      %p68 = scmp.eq.s32.totalorder %s10, 1
      %p69 = por %p67, %p68
      %p70 = scmp.ne.s32.totalorder %s62, %s65
      %p71 = scmp.eq.s32.totalorder %s10, 0
      %p72 = por %p70, %p71
      %p73 = scmp.ne.s32.totalorder %s62, %s65
      %p74 = scmp.eq.s32.totalorder %s15, 1
      %p75 = por %p73, %p74
      %p76 = scmp.ne.s32.totalorder %s65, %s66
      %p77 = scmp.eq.s32.totalorder %s15, 0
      %p78 = por %p76, %p77
      %p79 = scmp.ne.s32.totalorder %s65, %s66
      %p80 = scmp.eq.s32.totalorder %s16, 1
      %p81 = por %p79, %p80
      %p83 = scmp.ne.s32.totalorder %s66, %s82
      %p84 = scmp.eq.s32.totalorder %s16, 0
      %p85 = por %p83, %p84
      %p86 = scmp.le.s32.totalorder 1, %s10
      %p87 = scmp.lt.s32.totalorder %s10, 3
      %p88 = pnand %p86, %p87
      %p89 = pneg %p88
      // Predicated region
      $region9: #{tpu_custom_call.1} parent=5 // pred_check
        _
      $region10: #{tpu_custom_call.1} parent=5 // pred_check_branch
        %91 = sbr.rel (%p88) target = $region12
      $region11: #{tpu_custom_call.1} parent=5 // pred_region
        %s92 = ssub.s32 %s10, 1
      $region12: #{tpu_custom_call.1} parent=5 // pred_fallthru
        _
      %p93 = scmp.lt.s32.totalorder %s10, 2
      // Predicated region
      $region13: #{tpu_custom_call.1} parent=5 // pred_check
        %p94 = pneg %p93
      $region14: #{tpu_custom_call.1} parent=5 // pred_check_branch
        %96 = sbr.rel (%p94) target = $region16
      $region15: #{tpu_custom_call.1} parent=5 // pred_region
        // Predicated region
        $region17: #{tpu_custom_call.1} parent=15 // pred_check
          %p97 = pneg %p44
        $region18: #{tpu_custom_call.1} parent=15 // pred_check_branch
          %99 = sbr.rel (%p97) target = $region20
        $region19: #{tpu_custom_call.1} parent=15 // pred_region
          %s100 = sand.u32 %s34, 1
          %s101 = scalar_lea.sflag [#allocation3], %s100
          %s102 = sand.u32 %s34, 1
          %s103 = smul.addr %s102, 8
          %s104 = scalar_lea.vmem [#allocation2], %s103
          %s106 = ssub.s32 128, 128
          %107 = vsyncadd %s101, %s106
          %s108 = sadd.s32 %s18, %s17
          %s109 = smul.addr %s108, 128
          %s110 = scalar_lea.hbm %s0, %s109
          %s112 = sshll.u32 %s104, 4
          %s113 = int_to_ptr.vmem [resolvable:$true] %s112
          %115 = dma.hbm_to_vmem [thread:$0]  %s110, 128, %s113, %s101
        $region20: #{tpu_custom_call.1} parent=15 // pred_fallthru
          _
      $region16: #{tpu_custom_call.1} parent=5 // pred_fallthru
        _
      %p116 = scmp.le.s32.totalorder 1, %s10
      %p117 = scmp.lt.s32.totalorder %s10, 3
      %p118 = pnand %p116, %p117
      %p119 = pneg %p118
      // Predicated region
      $region21: #{tpu_custom_call.1} parent=5 // pred_check
        _
      $region22: #{tpu_custom_call.1} parent=5 // pred_check_branch
        %121 = sbr.rel (%p118) target = $region24
      $region23: #{tpu_custom_call.1} parent=5 // pred_region
        %s122 = ssub.s32 %s10, 1
        %s123 = sand.u32 %s37, 1
        %s124 = scalar_lea.sflag [#allocation3], %s123
        %s125 = sand.u32 %s37, 1
        %s126 = smul.addr %s125, 8
        %s127 = scalar_lea.vmem [#allocation2], %s126
        // Predicated region
        $region25: #{tpu_custom_call.1} parent=23 // pred_check
          %p128 = pneg %p50
        $region26: #{tpu_custom_call.1} parent=23 // pred_check_branch
          %130 = sbr.rel (%p128) target = $region28
        $region27: #{tpu_custom_call.1} parent=23 // pred_region
          %131 = dma.done %s124, 128
        $region28: #{tpu_custom_call.1} parent=23 // pred_fallthru
          _
        %s132 = sand.u32 %s37, 1
        %s133 = scalar_lea.sflag [#allocation3], %s132
        %s134 = sand.u32 %s37, 1
        %s135 = smul.addr %s134, 8
        %s136 = scalar_lea.vmem [#allocation2], %s135
        %p137 = pneg %p50
        %p138 = pneg %p47
        %p139 = pneg %p78
        %p140 = pneg %p75
        %p141 = scmp.lt.s32.totalorder %s19, 1
        %s142 = scalar_select %p141, %s19, 1
        %p143 = scmp.lt.s32.totalorder %s20, 0
        %s144 = scalar_select %p143, %s20, 0
        %s145 = sadd.s32 %s144, %s142
        %s146 = smul.addr %s145, 8
        %s147 = scalar_lea.vmem %s1, %s146
        %p148 = scmp.lt.s32.totalorder %s19, 1
        %s149 = scalar_select %p148, %s19, 1
        %p150 = scmp.lt.s32.totalorder %s20, 0
        %s151 = scalar_select %p150, %s20, 0
        %s152 = sadd.s32 %s151, %s149
        %s153 = smul.addr %s152, 8
        %s154 = scalar_lea.vmem %s1, %s153
        %v155 = vld [vmem:[%s127 + $0x1] sm:$0x1]
        %vm156 = vcmask 253952
        %157 = vst.msk [vmem:[%s154] sm:$0x1] %vm156, %v155
        %v158 = vld [vmem:[%s127 + $0x3] sm:$0x1f]
        %vm159 = vcmask 258048
        %160 = vst.msk [vmem:[%s154 + $0x1] sm:$0x1f] %vm159, %v158
        %p161 = scmp.lt.s32.totalorder %s19, 1
        %s162 = scalar_select %p161, %s19, 1
        %p163 = scmp.lt.s32.totalorder %s20, 0
        %s164 = scalar_select %p163, %s20, 0
        %s165 = sadd.s32 %s164, %s162
        %s166 = smul.addr %s165, 8
        %s167 = scalar_lea.vmem %s1, %s166
        // Predicated region
        $region29: #{tpu_custom_call.1} parent=23 // pred_check
          %p168 = pneg %p75
        $region30: #{tpu_custom_call.1} parent=23 // pred_check_branch
          %170 = sbr.rel (%p168) target = $region32
        $region31: #{tpu_custom_call.1} parent=23 // pred_region
          _
        $region32: #{tpu_custom_call.1} parent=23 // pred_fallthru
          _
      $region24: #{tpu_custom_call.1} parent=5 // pred_fallthru
        _
      %p171 = scmp.le.s32.totalorder 2, %s10
      // Predicated region
      $region33: #{tpu_custom_call.1} parent=5 // pred_check
        %p172 = pneg %p171
      $region34: #{tpu_custom_call.1} parent=5 // pred_check_branch
        %174 = sbr.rel (%p172) target = $region36
      $region35: #{tpu_custom_call.1} parent=5 // pred_region
        %s175 = ssub.s32 %s10, 2
        // Predicated region
        $region37: #{tpu_custom_call.1} parent=35 // pred_check
          %p176 = pneg %p81
        $region38: #{tpu_custom_call.1} parent=35 // pred_check_branch
          %178 = sbr.rel (%p176) target = $region40
        $region39: #{tpu_custom_call.1} parent=35 // pred_region
          %p179 = scmp.lt.s32.totalorder %s21, 1
          %s180 = scalar_select %p179, %s21, 1
          %p181 = scmp.lt.s32.totalorder %s22, 0
          %s182 = scalar_select %p181, %s22, 0
          %s183 = sadd.s32 %s182, %s180
          %s184 = smul.addr %s183, 8
          %s185 = scalar_lea.vmem %s1, %s184
        $region40: #{tpu_custom_call.1} parent=35 // pred_fallthru
          _
      $region36: #{tpu_custom_call.1} parent=5 // pred_fallthru
        _
    $region6: #{tpu_custom_call.1} parent=1 // loop_footer
      %s14 = sadd.s32 1, %s10
    $region7: #{tpu_custom_call.1} parent=1 // loop_footer_branch
      %9 = sbr.rel target = $region3
    $region8: #{tpu_custom_call.1} parent=1 // loop_exit
      _
    %186 = vsyncpa [#allocation3], 1
    %s187 = scalar_lea.sflag [#allocation3], 1
    %188 = vsyncpa %s187, 1

</llo_original>
